<compile_context>
chip_gen: v7x
topology: tpu7x:2x2x1
jax: 0.10.0
libtpu: 0.0.40
codegen_flags: <defaults>
</compile_context>

<pallas_src>
import jax
import jax.numpy as jnp
from jax.experimental import pallas as pl
from jax.experimental.pallas import tpu as pltpu

_LANE = 128      # last block dim: full vreg lane width -> unmasked stores
_MAX_TS = 2048   # max sublane rows per block: 2048*128*4B = 1 MiB per channel (f32)


def _make_edge_blend_kernel(has_alpha: bool):
    def kernel(x_ref, edge_ref, ec_ref, ea_ref, o_ref):
        # x_ref / o_ref : (bn, C, tS, 128)  VMEM  (last two dims spatial)
        # edge_ref      : (bn, 1, tS, 128)  VMEM
        # ec_ref        : (3,)              SMEM  edgecolor
        # ea_ref        : (1,)              SMEM  edge_alpha
        e = edge_ref[...] * ea_ref[0]                       # (bn, 1, tS, 128)
        for c in range(3):                                  # static unroll
            xc = x_ref[:, c:c + 1, :, :]                    # (bn, 1, tS, 128)
            ec_c = ec_ref[c]                                # SMEM scalar splat
            o_ref[:, c:c + 1, :, :] = (xc + e * (ec_c - xc)).astype(o_ref.dtype)
        if has_alpha:                                       # alpha passes through
            o_ref[:, 3:4, :, :] = x_ref[:, 3:4, :, :]
    return kernel


def _pick_tiles(n: int, s: int):
    """Pick (bn, ts): sublane tile ts (<= _MAX_TS) and batch fold bn."""
    if s <= _MAX_TS:
        ts = s                                  # full extent -> always legal
        bn_cap = max(1, min(n, _MAX_TS // max(s, 1)))
        bn = 1
        for d in range(1, bn_cap + 1):          # largest divisor of n <= cap
            if n % d == 0:
                bn = d
    else:
        ts = _MAX_TS                            # multiple of 8; ragged last block OK
        bn = 1
    return bn, ts


def edge_blend_effect(x, edge, edgecolor, edge_alpha=1.0):
    """Pallas implementation of EdgeBlendEffect.forward.

    x:         (N, C, H, W), C in {3, 4}
    edge:      (N, 1, H, W)
    edgecolor: (3,)  (module default [0, 0, 0])
    edge_alpha: scalar
    """
    N, C, H, W = x.shape
    assert C in (3, 4), "expected RGB or RGBA input"
    assert edge.shape == (N, 1, H, W)
    has_alpha = (C == 4)
    hw = H * W

    # Layout plumbing: flatten spatial dims and lay them out as (S, 128) so the
    # block's last two dims are spatial (dense sublanes + dense lanes).
    S = pl.cdiv(hw, _LANE)
    padded = S * _LANE
    xf = x.reshape(N, C, hw)
    ef = edge.reshape(N, 1, hw)
    if padded != hw:
        xf = jnp.pad(xf, ((0, 0), (0, 0), (0, padded - hw)))
        ef = jnp.pad(ef, ((0, 0), (0, 0), (0, padded - hw)))
    xp = xf.reshape(N, C, S, _LANE)
    ep = ef.reshape(N, 1, S, _LANE)

    ec = jnp.asarray(edgecolor, jnp.float32).reshape(3)
    ea = jnp.asarray(edge_alpha, jnp.float32).reshape(1)

    bn, ts = _pick_tiles(N, S)
    grid = (N // bn, pl.cdiv(S, ts))

    itemsize = jnp.dtype(x.dtype).itemsize
    cost = pl.CostEstimate(
        flops=4 * N * 3 * hw,                          # mul+sub+mul+add per RGB elem
        transcendentals=0,
        bytes_accessed=(2 * C + 1) * N * hw * itemsize,
    )

    out = pl.pallas_call(
        _make_edge_blend_kernel(has_alpha),
        out_shape=jax.ShapeDtypeStruct((N, C, S, _LANE), x.dtype),
        grid=grid,
        in_specs=[
            pl.BlockSpec((bn, C, ts, _LANE), lambda b, s: (b, 0, s, 0)),
            pl.BlockSpec((bn, 1, ts, _LANE), lambda b, s: (b, 0, s, 0)),
            pl.BlockSpec(memory_space=pltpu.MemorySpace.SMEM),
            pl.BlockSpec(memory_space=pltpu.MemorySpace.SMEM),
        ],
        out_specs=pl.BlockSpec((bn, C, ts, _LANE), lambda b, s: (b, 0, s, 0)),
        compiler_params=pltpu.CompilerParams(
            dimension_semantics=("parallel", "parallel"),
            vmem_limit_bytes=32 * 1024 * 1024,
        ),
        cost_estimate=cost,
    )(xp, ep, ec, ea)

    out = out.reshape(N, C, padded)[:, :, :hw]
    return out.reshape(N, C, H, W)


def edge_blend_reference(x, edge, edgecolor, edge_alpha=1.0):
    """Pure-JAX reference mirroring the PyTorch forward."""
    C = x.shape[1]
    x_rgb, x_a = (x[:, :3], x[:, 3:]) if C == 4 else (x, None)
    ec = jnp.asarray(edgecolor, jnp.float32).reshape(1, -1, 1, 1)
    edge = edge * edge_alpha
    res = x_rgb + edge * (ec - x_rgb)
    if x_a is not None:
        res = jnp.concatenate([res, x_a.astype(res.dtype)], axis=1)
    return res


if __name__ == "__main__":
    key = jax.random.PRNGKey(0)
    kx, ke = jax.random.split(key)

    # RGBA case (module's main path), default (black) edgecolor.
    N, C, H, W = 2, 4, 16, 16
    x = jax.random.uniform(kx, (N, C, H, W), dtype=jnp.float32)
    edge = jax.random.uniform(ke, (N, 1, H, W), dtype=jnp.float32)
    edgecolor = jnp.array([0.0, 0.0, 0.0], jnp.float32)  # module default
    edge_alpha = 0.75

    out = jax.block_until_ready(edge_blend_effect(x, edge, edgecolor, edge_alpha))
    ref = edge_blend_reference(x, edge, edgecolor, edge_alpha)
    assert out.shape == (N, C, H, W)
    assert jnp.allclose(out, ref, atol=1e-6, rtol=1e-6)

    # RGB-only case (no alpha plane).
    x3 = x[:, :3]
    out3 = jax.block_until_ready(edge_blend_effect(x3, edge, edgecolor, edge_alpha))
    ref3 = edge_blend_reference(x3, edge, edgecolor, edge_alpha)
    assert jnp.allclose(out3, ref3, atol=1e-6, rtol=1e-6)

    # Non-128-aligned spatial size + non-zero per-channel edgecolor
    # (exercises the wrapper padding path and per-channel scalars).
    kx2, ke2 = jax.random.split(ke)
    x5 = jax.random.uniform(kx2, (1, 4, 20, 20), dtype=jnp.float32)
    e5 = jax.random.uniform(ke2, (1, 1, 20, 20), dtype=jnp.float32)
    ec2 = jnp.array([0.2, 0.5, 0.8], jnp.float32)
    out5 = jax.block_until_ready(edge_blend_effect(x5, e5, ec2, 0.3))
    ref5 = edge_blend_reference(x5, e5, ec2, 0.3)
    assert jnp.allclose(out5, ref5, atol=1e-6, rtol=1e-6)

    print("KERNEL_OK")
</pallas_src>

<mosaic_0001>
module attributes {stable_mosaic.version = 11 : i64} {
  func.func @kernel(%arg0: i32, %arg1: i32, %arg2: memref<2x4x2x128xf32, #tpu.memory_space<vmem>>, %arg3: memref<2x1x2x128xf32, #tpu.memory_space<vmem>>, %arg4: memref<3xf32, #tpu.memory_space<smem>>, %arg5: memref<1xf32, #tpu.memory_space<smem>>, %arg6: memref<2x4x2x128xf32, #tpu.memory_space<vmem>>) attributes {dimension_semantics = [#tpu.dimension_semantics<parallel>, #tpu.dimension_semantics<parallel>], iteration_bounds = array<i64: 1, 1>, scalar_prefetch = 0 : i64, scratch_operands = 0 : i64, tpu.core_type = #tpu.core_type<tc>, window_params = [{transform_indices = @transform_0, window_bounds = array<i64: 2, 4, 2, 128>}, {transform_indices = @transform_1, window_bounds = array<i64: 2, 1, 2, 128>}, {transform_indices = @transform_2, window_bounds = array<i64: 3>}, {transform_indices = @transform_3, window_bounds = array<i64: 1>}, {transform_indices = @transform_4, window_bounds = array<i64: 2, 4, 2, 128>}]} {
    %c0 = arith.constant 0 : index
    %c0_0 = arith.constant 0 : index
    %c0_1 = arith.constant 0 : index
    %c0_2 = arith.constant 0 : index
    %0 = vector.load %arg3[%c0, %c0_0, %c0_1, %c0_2] : memref<2x1x2x128xf32, #tpu.memory_space<vmem>>, vector<2x1x2x128xf32>
    %c0_3 = arith.constant 0 : index
    %1 = memref.load %arg5[%c0_3] : memref<1xf32, #tpu.memory_space<smem>>
    %2 = vector.broadcast %1 : f32 to vector<2x1x2x128xf32>
    %3 = arith.mulf %0, %2 : vector<2x1x2x128xf32>
    %c0_4 = arith.constant 0 : index
    %c0_5 = arith.constant 0 : index
    %c0_6 = arith.constant 0 : index
    %c0_7 = arith.constant 0 : index
    %4 = vector.load %arg2[%c0_4, %c0_5, %c0_6, %c0_7] : memref<2x4x2x128xf32, #tpu.memory_space<vmem>>, vector<2x1x2x128xf32>
    %c0_8 = arith.constant 0 : index
    %5 = memref.load %arg4[%c0_8] : memref<3xf32, #tpu.memory_space<smem>>
    %6 = vector.broadcast %5 : f32 to vector<2x1x2x128xf32>
    %7 = arith.subf %6, %4 : vector<2x1x2x128xf32>
    %8 = arith.mulf %3, %7 : vector<2x1x2x128xf32>
    %9 = arith.addf %4, %8 : vector<2x1x2x128xf32>
    %c0_9 = arith.constant 0 : index
    %c0_10 = arith.constant 0 : index
    %c0_11 = arith.constant 0 : index
    %c0_12 = arith.constant 0 : index
    %10 = vector.load %arg6[%c0_9, %c0_10, %c0_11, %c0_12] : memref<2x4x2x128xf32, #tpu.memory_space<vmem>>, vector<2x1x2x128xf32>
    tpu.vector_store %arg6[%c0_9, %c0_10, %c0_11, %c0_12], %9 {strides = array<i32>} : memref<2x4x2x128xf32, #tpu.memory_space<vmem>>, vector<2x1x2x128xf32>,
    %c0_13 = arith.constant 0 : index
    %c1 = arith.constant 1 : index
    %c0_14 = arith.constant 0 : index
    %c0_15 = arith.constant 0 : index
    %11 = vector.load %arg2[%c0_13, %c1, %c0_14, %c0_15] : memref<2x4x2x128xf32, #tpu.memory_space<vmem>>, vector<2x1x2x128xf32>
    %c1_16 = arith.constant 1 : index
    %12 = memref.load %arg4[%c1_16] : memref<3xf32, #tpu.memory_space<smem>>
    %13 = vector.broadcast %12 : f32 to vector<2x1x2x128xf32>
    %14 = arith.subf %13, %11 : vector<2x1x2x128xf32>
    %15 = arith.mulf %3, %14 : vector<2x1x2x128xf32>
    %16 = arith.addf %11, %15 : vector<2x1x2x128xf32>
    %c0_17 = arith.constant 0 : index
    %c1_18 = arith.constant 1 : index
    %c0_19 = arith.constant 0 : index
    %c0_20 = arith.constant 0 : index
    %17 = vector.load %arg6[%c0_17, %c1_18, %c0_19, %c0_20] : memref<2x4x2x128xf32, #tpu.memory_space<vmem>>, vector<2x1x2x128xf32>
    tpu.vector_store %arg6[%c0_17, %c1_18, %c0_19, %c0_20], %16 {strides = array<i32>} : memref<2x4x2x128xf32, #tpu.memory_space<vmem>>, vector<2x1x2x128xf32>,
    %c0_21 = arith.constant 0 : index
    %c2 = arith.constant 2 : index
    %c0_22 = arith.constant 0 : index
    %c0_23 = arith.constant 0 : index
    %18 = vector.load %arg2[%c0_21, %c2, %c0_22, %c0_23] : memref<2x4x2x128xf32, #tpu.memory_space<vmem>>, vector<2x1x2x128xf32>
    %c2_24 = arith.constant 2 : index
    %19 = memref.load %arg4[%c2_24] : memref<3xf32, #tpu.memory_space<smem>>
    %20 = vector.broadcast %19 : f32 to vector<2x1x2x128xf32>
    %21 = arith.subf %20, %18 : vector<2x1x2x128xf32>
    %22 = arith.mulf %3, %21 : vector<2x1x2x128xf32>
    %23 = arith.addf %18, %22 : vector<2x1x2x128xf32>
    %c0_25 = arith.constant 0 : index
    %c2_26 = arith.constant 2 : index
    %c0_27 = arith.constant 0 : index
    %c0_28 = arith.constant 0 : index
    %24 = vector.load %arg6[%c0_25, %c2_26, %c0_27, %c0_28] : memref<2x4x2x128xf32, #tpu.memory_space<vmem>>, vector<2x1x2x128xf32>
    tpu.vector_store %arg6[%c0_25, %c2_26, %c0_27, %c0_28], %23 {strides = array<i32>} : memref<2x4x2x128xf32, #tpu.memory_space<vmem>>, vector<2x1x2x128xf32>,
    %c0_29 = arith.constant 0 : index
    %c3 = arith.constant 3 : index
    %c0_30 = arith.constant 0 : index
    %c0_31 = arith.constant 0 : index
    %25 = vector.load %arg2[%c0_29, %c3, %c0_30, %c0_31] : memref<2x4x2x128xf32, #tpu.memory_space<vmem>>, vector<2x1x2x128xf32>
    %c0_32 = arith.constant 0 : index
    %c3_33 = arith.constant 3 : index
    %c0_34 = arith.constant 0 : index
    %c0_35 = arith.constant 0 : index
    %26 = vector.load %arg6[%c0_32, %c3_33, %c0_34, %c0_35] : memref<2x4x2x128xf32, #tpu.memory_space<vmem>>, vector<2x1x2x128xf32>
    tpu.vector_store %arg6[%c0_32, %c3_33, %c0_34, %c0_35], %25 {strides = array<i32>} : memref<2x4x2x128xf32, #tpu.memory_space<vmem>>, vector<2x1x2x128xf32>,
    return
  }
  func.func @transform_0(%arg0: i32, %arg1: i32) -> (i32, i32, i32, i32) {
    %c0_i32 = arith.constant 0 : i32
    %c0_i32_0 = arith.constant 0 : i32
    %c0_i32_1 = arith.constant 0 : i32
    return %arg0, %c0_i32, %arg1, %c0_i32_0 : i32, i32, i32, i32
  }
  func.func @transform_1(%arg0: i32, %arg1: i32) -> (i32, i32, i32, i32) {
    %c0_i32 = arith.constant 0 : i32
    %c0_i32_0 = arith.constant 0 : i32
    %c0_i32_1 = arith.constant 0 : i32
    return %arg0, %c0_i32, %arg1, %c0_i32_0 : i32, i32, i32, i32
  }
  func.func @transform_2(%arg0: i32, %arg1: i32) -> i32 {
    %c0_i32 = arith.constant 0 : i32
    %c0_i32_0 = arith.constant 0 : i32
    return %c0_i32 : i32
  }
  func.func @transform_3(%arg0: i32, %arg1: i32) -> i32 {
    %c0_i32 = arith.constant 0 : i32
    %c0_i32_0 = arith.constant 0 : i32
    return %c0_i32 : i32
  }
  func.func @transform_4(%arg0: i32, %arg1: i32) -> (i32, i32, i32, i32) {
    %c0_i32 = arith.constant 0 : i32
    %c0_i32_0 = arith.constant 0 : i32
    %c0_i32_1 = arith.constant 0 : i32
    return %arg0, %c0_i32, %arg1, %c0_i32_0 : i32, i32, i32, i32
  }
}

</mosaic_0001>

<llo_original>
// kernel: tpu_custom_call.1
$region0: #{tpu_custom_call.1}
  #allocation0 [shape = 'u32[]', space=smem, size = 0x4, offset = 0x4, fixed_abs, tag = 'smem constant byte address 0x4 - core index']
  #allocation1 [shape = 'u32[144,128]{1,0:T(1,128)}', space=vmem, size = 0x12000, scoped, tag = 'internal scratch']
  #allocation2 [shape = 'f32[1]{0:T(128)S(6)}', space=smem, size = 0x200, scoped, tag = 'scoped memory for tpu_custom_call.1']
  %s0 = inlined_call_operand.hbm [shape: f32[2,4,2,128], index: 0, kind: input, shape index: {}]
  %s1 = inlined_call_operand.vmem [shape: f32[2,1,2,128], index: 1, kind: input, shape index: {}]
  %s2 = inlined_call_operand.vmem [shape: f32[3], index: 2, kind: input, shape index: {}]
  %s3 = inlined_call_operand.<no memory space> [shape: f32[1], index: 3, kind: input, shape index: {}]
  %s4 = inlined_call_operand.hbm [shape: f32[2,4,2,128], index: 4, kind: output, shape index: {}]
  %s5 = sld [smem:[#allocation0]]
  $region34: #{tpu_custom_call.1} parent=0
    _
  %s7 = ssub.s32 1, %s5
  %s8 = scalar_select 0, %s7, %s5
  %9 = sst [smem:[#allocation2]] %s3
  $region1: #{tpu_custom_call.1} parent=0
    #allocation3 [shape = 'u8[8192]{0}', space=vmem, size = 0x2000, scoped, tag = 'input window, operand 0, single buffered']
    #allocation4 [shape = 's32[1]{0}', space=sflag, size = 0x4, scoped, tag = 'scoped memory for tpu_custom_call.1']
    #allocation5 [shape = 's32[1]{0}', space=sflag, size = 0x4, scoped, tag = 'scoped memory for tpu_custom_call.1']
    #allocation6 [shape = 's32[1]{0}', space=sflag, size = 0x4, scoped, tag = 'scoped memory for tpu_custom_call.1']
    #allocation7 [shape = 'u8[512]{0}', space=smem, size = 0x200, scoped, tag = 'input window, operand 2, single buffered']
    #allocation8 [shape = 'u8[8192]{0}', space=vmem, size = 0x2000, scoped, tag = 'output window, operand 0, single buffered']
    %10 = vsyncpa [#allocation4], 0
    %11 = vsyncpa [#allocation6], 0
    %12 = vsyncpa [#allocation5], 0
    // Predicated region
    $region2: #{tpu_custom_call.1} parent=1 // pred_check
      _
    $region3: #{tpu_custom_call.1} parent=1 // pred_check_branch
      %14 = sbr.rel (0) target = $region5
    $region4: #{tpu_custom_call.1} parent=1 // pred_region
      %s16 = ssub.s32 256, 256
      %17 = vsyncadd [#allocation4], %s16
      %s18 = sshll.u32 [#allocation3], 4
      %s19 = int_to_ptr.vmem [resolvable:$true] %s18
      %24 = dma.hbm_to_vmem [thread:$0]  %s0, 256, %s19, [#allocation4], 32, 32, 2
    $region5: #{tpu_custom_call.1} parent=1 // pred_fallthru
      _
    // Predicated region
    $region6: #{tpu_custom_call.1} parent=1 // pred_check
      _
    $region7: #{tpu_custom_call.1} parent=1 // pred_check_branch
      %26 = sbr.rel (0) target = $region9
    $region8: #{tpu_custom_call.1} parent=1 // pred_region
      _
    $region9: #{tpu_custom_call.1} parent=1 // pred_fallthru
      _
    // Predicated region
    $region10: #{tpu_custom_call.1} parent=1 // pred_check
      _
    $region11: #{tpu_custom_call.1} parent=1 // pred_check_branch
      %28 = sbr.rel (0) target = $region13
    $region12: #{tpu_custom_call.1} parent=1 // pred_region
      %s30 = ssub.s32 16, 16
      %31 = vsyncadd [#allocation6], %s30
      %s33 = sshll.u32 %s2, 4
      %s34 = int_to_ptr.vmem [resolvable:$true] %s33
      %36 = dma.vmem_to_smem %s34, 16, [#allocation7], [#allocation6]
    $region13: #{tpu_custom_call.1} parent=1 // pred_fallthru
      _
    // Predicated region
    $region14: #{tpu_custom_call.1} parent=1 // pred_check
      _
    $region15: #{tpu_custom_call.1} parent=1 // pred_check_branch
      %38 = sbr.rel (0) target = $region17
    $region16: #{tpu_custom_call.1} parent=1 // pred_region
      _
    $region17: #{tpu_custom_call.1} parent=1 // pred_fallthru
      _
    // Predicated region
    $region18: #{tpu_custom_call.1} parent=1 // pred_check
      _
    $region19: #{tpu_custom_call.1} parent=1 // pred_check_branch
      %40 = sbr.rel (0) target = $region21
    $region20: #{tpu_custom_call.1} parent=1 // pred_region
      %41 = dma.done [#allocation4], 256
    $region21: #{tpu_custom_call.1} parent=1 // pred_fallthru
      _
    // Predicated region
    $region22: #{tpu_custom_call.1} parent=1 // pred_check
      _
    $region23: #{tpu_custom_call.1} parent=1 // pred_check_branch
      %43 = sbr.rel (0) target = $region25
    $region24: #{tpu_custom_call.1} parent=1 // pred_region
      %44 = dma.done [#allocation6], 16
    $region25: #{tpu_custom_call.1} parent=1 // pred_fallthru
      _
    %45 = sfence
    %v46 = vld [vmem:[%s1] sm:$0x3]
    %v47 = vld [vmem:[%s1 + $0x2] sm:$0x3]
    %s48 = sld [smem:[#allocation2]]
    %v49 = vstv %s48
    %v50 = vmul.f32 %v46, %v49
    %v51 = vmul.f32 %v47, %v49
    %v52 = vld [vmem:[#allocation3] sm:$0x3]
    %v53 = vld [vmem:[#allocation3 + $0x8] sm:$0x3]
    %s54 = sld [smem:[#allocation7]]
    %v55 = vstv %s54
    %v56 = vsub.f32 %v55, %v52
    %v57 = vsub.f32 %v55, %v53
    %v58 = vmul.f32 %v50, %v56
    %v59 = vmul.f32 %v51, %v57
    %v60 = vadd.f32 %v52, %v58
    %v61 = vadd.f32 %v53, %v59
    %62 = vst [vmem:[#allocation8] sm:$0x3] %v60
    %63 = vst [vmem:[#allocation8 + $0x8] sm:$0x3] %v61
    %s64 = scalar_lea.vmem [#allocation3], 2
    %v65 = vld [vmem:[%s64] sm:$0x3]
    %v66 = vld [vmem:[%s64 + $0x8] sm:$0x3]
    %s67 = sld [smem:[#allocation7 + $0x1]]
    %v68 = vstv %s67
    %v69 = vsub.f32 %v68, %v65
    %v70 = vsub.f32 %v68, %v66
    %v71 = vmul.f32 %v50, %v69
    %v72 = vmul.f32 %v51, %v70
    %v73 = vadd.f32 %v65, %v71
    %v74 = vadd.f32 %v66, %v72
    %s75 = scalar_lea.vmem [#allocation8], 2
    %76 = vst [vmem:[%s75] sm:$0x3] %v73
    %77 = vst [vmem:[%s75 + $0x8] sm:$0x3] %v74
    %s78 = scalar_lea.vmem [#allocation3], 4
    %v79 = vld [vmem:[%s78] sm:$0x3]
    %v80 = vld [vmem:[%s78 + $0x8] sm:$0x3]
    %s81 = sld [smem:[#allocation7 + $0x2]]
    %v82 = vstv %s81
    %v83 = vsub.f32 %v82, %v79
    %v84 = vsub.f32 %v82, %v80
    %v85 = vmul.f32 %v50, %v83
    %v86 = vmul.f32 %v51, %v84
    %v87 = vadd.f32 %v79, %v85
    %v88 = vadd.f32 %v80, %v86
    %s89 = scalar_lea.vmem [#allocation8], 4
    %90 = vst [vmem:[%s89] sm:$0x3] %v87
    %91 = vst [vmem:[%s89 + $0x8] sm:$0x3] %v88
    %s92 = scalar_lea.vmem [#allocation3], 6
    %v93 = vld [vmem:[%s92] sm:$0x3]
    %v94 = vld [vmem:[%s92 + $0x8] sm:$0x3]
    %s95 = scalar_lea.vmem [#allocation8], 6
    %96 = vst [vmem:[%s95] sm:$0x3] %v93
    %97 = vst [vmem:[%s95 + $0x8] sm:$0x3] %v94
    // Predicated region
    $region26: #{tpu_custom_call.1} parent=1 // pred_check
      _
    $region27: #{tpu_custom_call.1} parent=1 // pred_check_branch
      %99 = sbr.rel (0) target = $region29
    $region28: #{tpu_custom_call.1} parent=1 // pred_region
      %s101 = ssub.s32 256, 256
      %102 = vsyncadd [#allocation5], %s101
      %s103 = sshll.u32 [#allocation8], 4
      %s104 = int_to_ptr.vmem [resolvable:$true] %s103
      %109 = dma.vmem_to_hbm [thread:$0]  %s104, 256, %s4, [#allocation5], 32, 32, 2
    $region29: #{tpu_custom_call.1} parent=1 // pred_fallthru
      _
    // Predicated region
    $region30: #{tpu_custom_call.1} parent=1 // pred_check
      _
    $region31: #{tpu_custom_call.1} parent=1 // pred_check_branch
      %111 = sbr.rel (0) target = $region33
    $region32: #{tpu_custom_call.1} parent=1 // pred_region
      %112 = dma.done [#allocation5], 256
    $region33: #{tpu_custom_call.1} parent=1 // pred_fallthru
      _
    %113 = vsyncpa [#allocation4], 1
    %114 = vsyncpa [#allocation5], 1
    %115 = vsyncpa [#allocation6], 1

</llo_original>
